<compile_context>
chip_gen: v6e
topology: v6e:2x2x1
jax: 0.10.0
libtpu: 0.0.40
codegen_flags: <defaults>
</compile_context>

<pallas_src>
import jax
import jax.numpy as jnp
from jax.experimental import pallas as pl
from jax.experimental.pallas import tpu as pltpu


_LANE = 128
_SUBLANE = 8
# Conservative per-kernel VMEM planning budget: v7x physical VMEM is 64 MiB,
# v5e/v6e have 128 MiB; ~24 MiB leaves room for double buffers + compiler
# scratch on every generation.
_VMEM_BUDGET = 24 * 1024 * 1024


def _round_up(x, m):
    return (x + m - 1) // m * m


def _vmem_need(tb, numwords, e_pad, n_pad, c_pad):
    """Rough VMEM bytes for one batch tile: resident tables + double-buffered
    streamed tiles + the main in-kernel temporaries."""
    resident = numwords * e_pad * 2 + e_pad * n_pad * 2          # bf16 docmat + emb.T
    streamed = 2 * (tb * numwords * 2 + tb * c_pad * 4)          # doc + cand ids (x2 bufs)
    streamed += 2 * 2 * (tb * c_pad * 4)                         # two f32 outputs (x2 bufs)
    temps = 3 * tb * n_pad * 4                                   # s_all + select temporaries
    temps += 3 * tb * e_pad * 4 + 4 * tb * c_pad * 4             # ctx + softmax temporaries
    return resident + streamed + temps


def _pick_block_bs(bs, numwords, e_pad, n_pad, c_pad):
    """VMEM-aware batch-tile pick (multiple of 8 sublanes, 128/256-friendly)."""
    bs8 = _round_up(bs, _SUBLANE)
    for tb in (512, 256, 128, 64, 32, 16, 8):
        if tb <= bs8 and _vmem_need(tb, numwords, e_pad, n_pad, c_pad) <= _VMEM_BUDGET:
            # Prefer at least two grid steps so the "parallel" batch axis can
            # actually split across v7x's two TensorCores.
            if tb == bs8 and bs8 >= 16:
                tb = max(_SUBLANE, tb // 2)
            return tb
    return _SUBLANE


def _make_el_kernel(num_cands):
    neg_big = -1e30

    def kernel(doc_ref, docmat_ref, embt_ref, cands_ref, scores_ref, probs_ref):
        tb, c_pad = scores_ref.shape
        n_pad = embt_ref.shape[1]

        # 1) Context encoding on the MXU (bf16 operands, f32 accumulation).
        ctx = jnp.dot(doc_ref[...], docmat_ref[...],
                      preferred_element_type=jnp.float32)            # (tb, e_pad)

        # 2) Scores against *all* entities on the MXU (replaces the previous
        #    per-candidate HBM row gather + VPU broadcast / XLU reduce).
        s_all = jnp.dot(ctx.astype(jnp.bfloat16), embt_ref[...],
                        preferred_element_type=jnp.float32)          # (tb, n_pad)

        # 3) Pick the candidate columns: scores[b, c] = s_all[b, cands[b, c]].
        #    Short static loop of 2-D lane-masked reductions; padded candidate
        #    lanes stay at -1e30 from the single full-lane init store.
        # TODO(synk): swap for a hardware dynamic lane-gather / deduped-gather
        # path when numens gets large.
        scores_ref[...] = jnp.full((tb, c_pad), neg_big, jnp.float32)
        cand_ids = cands_ref[...]                                    # (tb, c_pad) i32
        ent_iota = jax.lax.broadcasted_iota(jnp.int32, (tb, n_pad), 1)
        for c in range(num_cands):                                   # small static unroll
            hit = ent_iota == cand_ids[:, c:c + 1]                   # (tb, n_pad)
            col = jnp.sum(jnp.where(hit, s_all, 0.0), axis=-1, keepdims=True)
            scores_ref[:, c:c + 1] = col

        # 4) Numerically stable softmax over candidates (exact normalization).
        scores = scores_ref[...]
        m = jnp.max(scores, axis=-1, keepdims=True)
        e = jnp.exp(scores - m)                       # padded lanes -> exp = 0
        probs_ref[...] = e / jnp.sum(e, axis=-1, keepdims=True)

    return kernel


def el_forward(doc, docmat, entityembeds, cands, *, block_bs=None):
    """Pallas TPU implementation of ELModel.forward.

    doc:          (bs, numwords)    float
    docmat:       (numwords, edim)  float
    entityembeds: (numens, edim)    float
    cands:        (bs, num_cands)   int
    Returns (cand_en_scores, cand_en_probs), each (bs, num_cands) float32.
    """
    bs, num_cands = cands.shape
    numwords, edim = docmat.shape
    numens = entityembeds.shape[0]

    # Pad the MXU-facing dims to full 128-lane tiles; candidate axis of the
    # outputs is padded to a lane-dense width.
    e_pad = _round_up(edim, _LANE)
    n_pad = _round_up(numens, _LANE)
    c_pad = _round_up(num_cands, _LANE)

    if _vmem_need(_SUBLANE, numwords, e_pad, n_pad, c_pad) > _VMEM_BUDGET:
        # TODO(synk): deduplicated HBM gather + K-tiled docmat fallback.
        raise NotImplementedError(
            "VMEM-resident path needs docmat + entity table to fit the budget")

    if block_bs is None:
        block_bs = _pick_block_bs(bs, numwords, e_pad, n_pad, c_pad)
    assert block_bs % _SUBLANE == 0, "batch tile must be a multiple of 8"

    grid = pl.cdiv(bs, block_bs)
    bs_pad = grid * block_bs

    # bf16 storage for everything coming from HBM; zero padding is harmless
    # (padded entity columns score 0 and are never selected, padded batch rows
    # are sliced off).
    doc_b = jnp.zeros((bs_pad, numwords), jnp.bfloat16)
    doc_b = doc_b.at[:bs, :].set(doc.astype(jnp.bfloat16))
    docmat_b = jnp.zeros((numwords, e_pad), jnp.bfloat16)
    docmat_b = docmat_b.at[:, :edim].set(docmat.astype(jnp.bfloat16))
    embt_b = jnp.zeros((e_pad, n_pad), jnp.bfloat16)
    embt_b = embt_b.at[:edim, :numens].set(entityembeds.astype(jnp.bfloat16).T)
    cands_p = jnp.zeros((bs_pad, c_pad), jnp.int32)
    cands_p = cands_p.at[:bs, :num_cands].set(cands.astype(jnp.int32))

    kernel = _make_el_kernel(num_cands)

    grid_spec = pltpu.PrefetchScalarGridSpec(
        num_scalar_prefetch=0,
        grid=(grid,),
        in_specs=[
            pl.BlockSpec((block_bs, numwords), lambda i: (i, 0)),   # doc tile
            pl.BlockSpec((numwords, e_pad), lambda i: (0, 0)),      # docmat (VMEM resident)
            pl.BlockSpec((e_pad, n_pad), lambda i: (0, 0)),         # emb.T  (VMEM resident)
            pl.BlockSpec((block_bs, c_pad), lambda i: (i, 0)),      # candidate ids
        ],
        out_specs=(
            pl.BlockSpec((block_bs, c_pad), lambda i: (i, 0)),      # scores
            pl.BlockSpec((block_bs, c_pad), lambda i: (i, 0)),      # probs
        ),
    )

    est = _vmem_need(block_bs, numwords, e_pad, n_pad, c_pad)
    vmem_limit = int(max(16 * 1024 * 1024,
                         min(40 * 1024 * 1024, est + 8 * 1024 * 1024)))

    out_shape = (jax.ShapeDtypeStruct((bs_pad, c_pad), jnp.float32),
                 jax.ShapeDtypeStruct((bs_pad, c_pad), jnp.float32))

    scores_p, probs_p = pl.pallas_call(
        kernel,
        out_shape=out_shape,
        grid_spec=grid_spec,
        compiler_params=pltpu.CompilerParams(
            dimension_semantics=("parallel",),    # batch tiles are independent
            vmem_limit_bytes=vmem_limit),
    )(doc_b, docmat_b, embt_b, cands_p)

    # Slice off the batch / candidate-lane padding.
    return scores_p[:bs, :num_cands], probs_p[:bs, :num_cands]


if __name__ == "__main__":
    # Small shapes consistent with the module's forward.
    bs, num_cands, edim, numwords, numens = 8, 16, 32, 64, 128
    init_range = 0.1

    key = jax.random.PRNGKey(0)
    k1, k2, k3, k4 = jax.random.split(key, 4)

    # Parameters (uniform(-init_range, init_range), like the module init).
    entityembeds = jax.random.uniform(k1, (numens, edim), jnp.float32,
                                      -init_range, init_range)
    docmat = jax.random.uniform(k2, (numwords, edim), jnp.float32,
                                -init_range, init_range)

    # Inputs.
    doc = jax.random.uniform(k3, (bs, numwords), jnp.float32)       # "docsparse"
    cands = jax.random.randint(k4, (bs, num_cands), 0, numens, jnp.int32)

    scores, probs = el_forward(doc, docmat, entityembeds, cands)
    jax.block_until_ready((scores, probs))
    assert scores.shape == (bs, num_cands) and probs.shape == (bs, num_cands)

    # Tight reference mirroring the kernel's bf16 storage / rounding path.
    f32 = jnp.float32
    doc_b = doc.astype(jnp.bfloat16).astype(f32)
    docmat_b = docmat.astype(jnp.bfloat16).astype(f32)
    emb_b = entityembeds.astype(jnp.bfloat16).astype(f32)
    ctx_b = (doc_b @ docmat_b).astype(jnp.bfloat16).astype(f32)
    cand_emb = jnp.take(emb_b, cands, axis=0)
    ref_scores = jnp.sum(ctx_b[:, None, :] * cand_emb, axis=-1)
    ref_probs = jax.nn.softmax(ref_scores, axis=1)
    assert jnp.allclose(scores, ref_scores, atol=2e-3, rtol=1e-2)
    assert jnp.allclose(probs, ref_probs, atol=2e-3)
    assert jnp.allclose(jnp.sum(probs, axis=1), 1.0, atol=1e-5)

    # Loose check against the original full-f32 module semantics.
    ctx32 = doc @ docmat
    cand32 = jnp.take(entityembeds, cands, axis=0)
    ref32_scores = jnp.sum(ctx32[:, None, :] * cand32, axis=-1)
    ref32_probs = jax.nn.softmax(ref32_scores, axis=1)
    assert jnp.allclose(scores, ref32_scores, atol=1e-2)
    assert jnp.allclose(probs, ref32_probs, atol=1e-2)

    print("KERNEL_OK")
</pallas_src>

<mosaic_0001>
module attributes {stable_mosaic.version = 11 : i64} {
  func.func @kernel(%arg0: i32, %arg1: memref<8x64xbf16, #tpu.memory_space<vmem>>, %arg2: memref<64x128xbf16, #tpu.memory_space<vmem>>, %arg3: memref<128x128xbf16, #tpu.memory_space<vmem>>, %arg4: memref<8x128xi32, #tpu.memory_space<vmem>>, %arg5: memref<8x128xf32, #tpu.memory_space<vmem>>, %arg6: memref<8x128xf32, #tpu.memory_space<vmem>>) attributes {dimension_semantics = [#tpu.dimension_semantics<parallel>], iteration_bounds = array<i64: 1>, scalar_prefetch = 0 : i64, scratch_operands = 0 : i64, tpu.core_type = #tpu.core_type<tc>, window_params = [{transform_indices = @transform_0, window_bounds = array<i64: 8, 64>}, {pipeline_mode = #tpu.pipeline_mode<synchronous>, transform_indices = @transform_1, window_bounds = array<i64: 64, 128>}, {pipeline_mode = #tpu.pipeline_mode<synchronous>, transform_indices = @transform_2, window_bounds = array<i64: 128, 128>}, {transform_indices = @transform_3, window_bounds = array<i64: 8, 128>}, {transform_indices = @transform_4, window_bounds = array<i64: 8, 128>}, {transform_indices = @transform_5, window_bounds = array<i64: 8, 128>}]} {
    %c0 = arith.constant 0 : index
    %c0_0 = arith.constant 0 : index
    %0 = vector.load %arg1[%c0, %c0_0] : memref<8x64xbf16, #tpu.memory_space<vmem>>, vector<8x64xbf16>
    %c0_1 = arith.constant 0 : index
    %c0_2 = arith.constant 0 : index
    %1 = vector.load %arg2[%c0_1, %c0_2] : memref<64x128xbf16, #tpu.memory_space<vmem>>, vector<64x128xbf16>
    %cst = arith.constant dense<0.000000e+00> : vector<8x128xf32>
    %2 = tpu.matmul %0, %1, %cst {dimension_numbers = #tpu.dot_dimension_numbers<[1], [0], [0], [1], [0, 0, 1, 1], [], []>} : vector<8x64xbf16>, vector<64x128xbf16>, vector<8x128xf32> -> vector<8x128xf32>
    %3 = arith.truncf %2 : vector<8x128xf32> to vector<8x128xbf16>
    %c0_3 = arith.constant 0 : index
    %c0_4 = arith.constant 0 : index
    %4 = vector.load %arg3[%c0_3, %c0_4] : memref<128x128xbf16, #tpu.memory_space<vmem>>, vector<128x128xbf16>
    %cst_5 = arith.constant dense<0.000000e+00> : vector<8x128xf32>
    %5 = tpu.matmul %3, %4, %cst_5 {dimension_numbers = #tpu.dot_dimension_numbers<[1], [0], [0], [1], [0, 0, 1, 1], [], []>} : vector<8x128xbf16>, vector<128x128xbf16>, vector<8x128xf32> -> vector<8x128xf32>
    %cst_6 = arith.constant -1.000000e+30 : f32
    %6 = vector.broadcast %cst_6 : f32 to vector<8x128xf32>
    %c0_7 = arith.constant 0 : index
    %c0_8 = arith.constant 0 : index
    %7 = vector.load %arg5[%c0_7, %c0_8] : memref<8x128xf32, #tpu.memory_space<vmem>>, vector<8x128xf32>
    tpu.vector_store %arg5[%c0_7, %c0_8], %6 {strides = array<i32>} : memref<8x128xf32, #tpu.memory_space<vmem>>, vector<8x128xf32>,
    %c0_9 = arith.constant 0 : index
    %c0_10 = arith.constant 0 : index
    %8 = vector.load %arg4[%c0_9, %c0_10] : memref<8x128xi32, #tpu.memory_space<vmem>>, vector<8x128xi32>
    %9 = tpu.iota {dimensions = array<i32: 1>} : vector<8x128xi32>
    %10 = vector.extract_strided_slice %8 {offsets = [0, 0], sizes = [8, 1], strides = [1, 1]} : vector<8x128xi32> to vector<8x1xi32>
    %11 = vector.broadcast %10 : vector<8x1xi32> to vector<8x128xi32>
    %12 = arith.cmpi eq, %9, %11 : vector<8x128xi32>
    %cst_11 = arith.constant 0.000000e+00 : f32
    %13 = vector.broadcast %cst_11 : f32 to vector<8x128xf32>
    %14 = arith.select %12, %5, %13 : vector<8x128xi1>, vector<8x128xf32>
    %cst_12 = arith.constant dense<0.000000e+00> : vector<8xf32>
    %15 = vector.multi_reduction <add>, %14, %cst_12 [1] : vector<8x128xf32> to vector<8xf32>
    %16 = vector.shape_cast %15 : vector<8xf32> to vector<8x1xf32>
    %c0_13 = arith.constant 0 : index
    %c0_14 = arith.constant 0 : index
    %17 = vector.load %arg5[%c0_13, %c0_14] : memref<8x128xf32, #tpu.memory_space<vmem>>, vector<8x1xf32>
    tpu.vector_store %arg5[%c0_13, %c0_14], %16 {strides = array<i32>} : memref<8x128xf32, #tpu.memory_space<vmem>>, vector<8x1xf32>,
    %18 = vector.extract_strided_slice %8 {offsets = [0, 1], sizes = [8, 1], strides = [1, 1]} : vector<8x128xi32> to vector<8x1xi32>
    %19 = vector.broadcast %18 : vector<8x1xi32> to vector<8x128xi32>
    %20 = arith.cmpi eq, %9, %19 : vector<8x128xi32>
    %cst_15 = arith.constant 0.000000e+00 : f32
    %21 = vector.broadcast %cst_15 : f32 to vector<8x128xf32>
    %22 = arith.select %20, %5, %21 : vector<8x128xi1>, vector<8x128xf32>
    %cst_16 = arith.constant dense<0.000000e+00> : vector<8xf32>
    %23 = vector.multi_reduction <add>, %22, %cst_16 [1] : vector<8x128xf32> to vector<8xf32>
    %24 = vector.shape_cast %23 : vector<8xf32> to vector<8x1xf32>
    %c0_17 = arith.constant 0 : index
    %c1 = arith.constant 1 : index
    %25 = vector.load %arg5[%c0_17, %c1] : memref<8x128xf32, #tpu.memory_space<vmem>>, vector<8x1xf32>
    tpu.vector_store %arg5[%c0_17, %c1], %24 {strides = array<i32>} : memref<8x128xf32, #tpu.memory_space<vmem>>, vector<8x1xf32>,
    %26 = vector.extract_strided_slice %8 {offsets = [0, 2], sizes = [8, 1], strides = [1, 1]} : vector<8x128xi32> to vector<8x1xi32>
    %27 = vector.broadcast %26 : vector<8x1xi32> to vector<8x128xi32>
    %28 = arith.cmpi eq, %9, %27 : vector<8x128xi32>
    %cst_18 = arith.constant 0.000000e+00 : f32
    %29 = vector.broadcast %cst_18 : f32 to vector<8x128xf32>
    %30 = arith.select %28, %5, %29 : vector<8x128xi1>, vector<8x128xf32>
    %cst_19 = arith.constant dense<0.000000e+00> : vector<8xf32>
    %31 = vector.multi_reduction <add>, %30, %cst_19 [1] : vector<8x128xf32> to vector<8xf32>
    %32 = vector.shape_cast %31 : vector<8xf32> to vector<8x1xf32>
    %c0_20 = arith.constant 0 : index
    %c2 = arith.constant 2 : index
    %33 = vector.load %arg5[%c0_20, %c2] : memref<8x128xf32, #tpu.memory_space<vmem>>, vector<8x1xf32>
    tpu.vector_store %arg5[%c0_20, %c2], %32 {strides = array<i32>} : memref<8x128xf32, #tpu.memory_space<vmem>>, vector<8x1xf32>,
    %34 = vector.extract_strided_slice %8 {offsets = [0, 3], sizes = [8, 1], strides = [1, 1]} : vector<8x128xi32> to vector<8x1xi32>
    %35 = vector.broadcast %34 : vector<8x1xi32> to vector<8x128xi32>
    %36 = arith.cmpi eq, %9, %35 : vector<8x128xi32>
    %cst_21 = arith.constant 0.000000e+00 : f32
    %37 = vector.broadcast %cst_21 : f32 to vector<8x128xf32>
    %38 = arith.select %36, %5, %37 : vector<8x128xi1>, vector<8x128xf32>
    %cst_22 = arith.constant dense<0.000000e+00> : vector<8xf32>
    %39 = vector.multi_reduction <add>, %38, %cst_22 [1] : vector<8x128xf32> to vector<8xf32>
    %40 = vector.shape_cast %39 : vector<8xf32> to vector<8x1xf32>
    %c0_23 = arith.constant 0 : index
    %c3 = arith.constant 3 : index
    %41 = vector.load %arg5[%c0_23, %c3] : memref<8x128xf32, #tpu.memory_space<vmem>>, vector<8x1xf32>
    tpu.vector_store %arg5[%c0_23, %c3], %40 {strides = array<i32>} : memref<8x128xf32, #tpu.memory_space<vmem>>, vector<8x1xf32>,
    %42 = vector.extract_strided_slice %8 {offsets = [0, 4], sizes = [8, 1], strides = [1, 1]} : vector<8x128xi32> to vector<8x1xi32>
    %43 = vector.broadcast %42 : vector<8x1xi32> to vector<8x128xi32>
    %44 = arith.cmpi eq, %9, %43 : vector<8x128xi32>
    %cst_24 = arith.constant 0.000000e+00 : f32
    %45 = vector.broadcast %cst_24 : f32 to vector<8x128xf32>
    %46 = arith.select %44, %5, %45 : vector<8x128xi1>, vector<8x128xf32>
    %cst_25 = arith.constant dense<0.000000e+00> : vector<8xf32>
    %47 = vector.multi_reduction <add>, %46, %cst_25 [1] : vector<8x128xf32> to vector<8xf32>
    %48 = vector.shape_cast %47 : vector<8xf32> to vector<8x1xf32>
    %c0_26 = arith.constant 0 : index
    %c4 = arith.constant 4 : index
    %49 = vector.load %arg5[%c0_26, %c4] : memref<8x128xf32, #tpu.memory_space<vmem>>, vector<8x1xf32>
    tpu.vector_store %arg5[%c0_26, %c4], %48 {strides = array<i32>} : memref<8x128xf32, #tpu.memory_space<vmem>>, vector<8x1xf32>,
    %50 = vector.extract_strided_slice %8 {offsets = [0, 5], sizes = [8, 1], strides = [1, 1]} : vector<8x128xi32> to vector<8x1xi32>
    %51 = vector.broadcast %50 : vector<8x1xi32> to vector<8x128xi32>
    %52 = arith.cmpi eq, %9, %51 : vector<8x128xi32>
    %cst_27 = arith.constant 0.000000e+00 : f32
    %53 = vector.broadcast %cst_27 : f32 to vector<8x128xf32>
    %54 = arith.select %52, %5, %53 : vector<8x128xi1>, vector<8x128xf32>
    %cst_28 = arith.constant dense<0.000000e+00> : vector<8xf32>
    %55 = vector.multi_reduction <add>, %54, %cst_28 [1] : vector<8x128xf32> to vector<8xf32>
    %56 = vector.shape_cast %55 : vector<8xf32> to vector<8x1xf32>
    %c0_29 = arith.constant 0 : index
    %c5 = arith.constant 5 : index
    %57 = vector.load %arg5[%c0_29, %c5] : memref<8x128xf32, #tpu.memory_space<vmem>>, vector<8x1xf32>
    tpu.vector_store %arg5[%c0_29, %c5], %56 {strides = array<i32>} : memref<8x128xf32, #tpu.memory_space<vmem>>, vector<8x1xf32>,
    %58 = vector.extract_strided_slice %8 {offsets = [0, 6], sizes = [8, 1], strides = [1, 1]} : vector<8x128xi32> to vector<8x1xi32>
    %59 = vector.broadcast %58 : vector<8x1xi32> to vector<8x128xi32>
    %60 = arith.cmpi eq, %9, %59 : vector<8x128xi32>
    %cst_30 = arith.constant 0.000000e+00 : f32
    %61 = vector.broadcast %cst_30 : f32 to vector<8x128xf32>
    %62 = arith.select %60, %5, %61 : vector<8x128xi1>, vector<8x128xf32>
    %cst_31 = arith.constant dense<0.000000e+00> : vector<8xf32>
    %63 = vector.multi_reduction <add>, %62, %cst_31 [1] : vector<8x128xf32> to vector<8xf32>
    %64 = vector.shape_cast %63 : vector<8xf32> to vector<8x1xf32>
    %c0_32 = arith.constant 0 : index
    %c6 = arith.constant 6 : index
    %65 = vector.load %arg5[%c0_32, %c6] : memref<8x128xf32, #tpu.memory_space<vmem>>, vector<8x1xf32>
    tpu.vector_store %arg5[%c0_32, %c6], %64 {strides = array<i32>} : memref<8x128xf32, #tpu.memory_space<vmem>>, vector<8x1xf32>,
    %66 = vector.extract_strided_slice %8 {offsets = [0, 7], sizes = [8, 1], strides = [1, 1]} : vector<8x128xi32> to vector<8x1xi32>
    %67 = vector.broadcast %66 : vector<8x1xi32> to vector<8x128xi32>
    %68 = arith.cmpi eq, %9, %67 : vector<8x128xi32>
    %cst_33 = arith.constant 0.000000e+00 : f32
    %69 = vector.broadcast %cst_33 : f32 to vector<8x128xf32>
    %70 = arith.select %68, %5, %69 : vector<8x128xi1>, vector<8x128xf32>
    %cst_34 = arith.constant dense<0.000000e+00> : vector<8xf32>
    %71 = vector.multi_reduction <add>, %70, %cst_34 [1] : vector<8x128xf32> to vector<8xf32>
    %72 = vector.shape_cast %71 : vector<8xf32> to vector<8x1xf32>
    %c0_35 = arith.constant 0 : index
    %c7 = arith.constant 7 : index
    %73 = vector.load %arg5[%c0_35, %c7] : memref<8x128xf32, #tpu.memory_space<vmem>>, vector<8x1xf32>
    tpu.vector_store %arg5[%c0_35, %c7], %72 {strides = array<i32>} : memref<8x128xf32, #tpu.memory_space<vmem>>, vector<8x1xf32>,
    %74 = vector.extract_strided_slice %8 {offsets = [0, 8], sizes = [8, 1], strides = [1, 1]} : vector<8x128xi32> to vector<8x1xi32>
    %75 = vector.broadcast %74 : vector<8x1xi32> to vector<8x128xi32>
    %76 = arith.cmpi eq, %9, %75 : vector<8x128xi32>
    %cst_36 = arith.constant 0.000000e+00 : f32
    %77 = vector.broadcast %cst_36 : f32 to vector<8x128xf32>
    %78 = arith.select %76, %5, %77 : vector<8x128xi1>, vector<8x128xf32>
    %cst_37 = arith.constant dense<0.000000e+00> : vector<8xf32>
    %79 = vector.multi_reduction <add>, %78, %cst_37 [1] : vector<8x128xf32> to vector<8xf32>
    %80 = vector.shape_cast %79 : vector<8xf32> to vector<8x1xf32>
    %c0_38 = arith.constant 0 : index
    %c8 = arith.constant 8 : index
    %81 = vector.load %arg5[%c0_38, %c8] : memref<8x128xf32, #tpu.memory_space<vmem>>, vector<8x1xf32>
    tpu.vector_store %arg5[%c0_38, %c8], %80 {strides = array<i32>} : memref<8x128xf32, #tpu.memory_space<vmem>>, vector<8x1xf32>,
    %82 = vector.extract_strided_slice %8 {offsets = [0, 9], sizes = [8, 1], strides = [1, 1]} : vector<8x128xi32> to vector<8x1xi32>
    %83 = vector.broadcast %82 : vector<8x1xi32> to vector<8x128xi32>
    %84 = arith.cmpi eq, %9, %83 : vector<8x128xi32>
    %cst_39 = arith.constant 0.000000e+00 : f32
    %85 = vector.broadcast %cst_39 : f32 to vector<8x128xf32>
    %86 = arith.select %84, %5, %85 : vector<8x128xi1>, vector<8x128xf32>
    %cst_40 = arith.constant dense<0.000000e+00> : vector<8xf32>
    %87 = vector.multi_reduction <add>, %86, %cst_40 [1] : vector<8x128xf32> to vector<8xf32>
    %88 = vector.shape_cast %87 : vector<8xf32> to vector<8x1xf32>
    %c0_41 = arith.constant 0 : index
    %c9 = arith.constant 9 : index
    %89 = vector.load %arg5[%c0_41, %c9] : memref<8x128xf32, #tpu.memory_space<vmem>>, vector<8x1xf32>
    tpu.vector_store %arg5[%c0_41, %c9], %88 {strides = array<i32>} : memref<8x128xf32, #tpu.memory_space<vmem>>, vector<8x1xf32>,
    %90 = vector.extract_strided_slice %8 {offsets = [0, 10], sizes = [8, 1], strides = [1, 1]} : vector<8x128xi32> to vector<8x1xi32>
    %91 = vector.broadcast %90 : vector<8x1xi32> to vector<8x128xi32>
    %92 = arith.cmpi eq, %9, %91 : vector<8x128xi32>
    %cst_42 = arith.constant 0.000000e+00 : f32
    %93 = vector.broadcast %cst_42 : f32 to vector<8x128xf32>
    %94 = arith.select %92, %5, %93 : vector<8x128xi1>, vector<8x128xf32>
    %cst_43 = arith.constant dense<0.000000e+00> : vector<8xf32>
    %95 = vector.multi_reduction <add>, %94, %cst_43 [1] : vector<8x128xf32> to vector<8xf32>
    %96 = vector.shape_cast %95 : vector<8xf32> to vector<8x1xf32>
    %c0_44 = arith.constant 0 : index
    %c10 = arith.constant 10 : index
    %97 = vector.load %arg5[%c0_44, %c10] : memref<8x128xf32, #tpu.memory_space<vmem>>, vector<8x1xf32>
    tpu.vector_store %arg5[%c0_44, %c10], %96 {strides = array<i32>} : memref<8x128xf32, #tpu.memory_space<vmem>>, vector<8x1xf32>,
    %98 = vector.extract_strided_slice %8 {offsets = [0, 11], sizes = [8, 1], strides = [1, 1]} : vector<8x128xi32> to vector<8x1xi32>
    %99 = vector.broadcast %98 : vector<8x1xi32> to vector<8x128xi32>
    %100 = arith.cmpi eq, %9, %99 : vector<8x128xi32>
    %cst_45 = arith.constant 0.000000e+00 : f32
    %101 = vector.broadcast %cst_45 : f32 to vector<8x128xf32>
    %102 = arith.select %100, %5, %101 : vector<8x128xi1>, vector<8x128xf32>
    %cst_46 = arith.constant dense<0.000000e+00> : vector<8xf32>
    %103 = vector.multi_reduction <add>, %102, %cst_46 [1] : vector<8x128xf32> to vector<8xf32>
    %104 = vector.shape_cast %103 : vector<8xf32> to vector<8x1xf32>
    %c0_47 = arith.constant 0 : index
    %c11 = arith.constant 11 : index
    %105 = vector.load %arg5[%c0_47, %c11] : memref<8x128xf32, #tpu.memory_space<vmem>>, vector<8x1xf32>
    tpu.vector_store %arg5[%c0_47, %c11], %104 {strides = array<i32>} : memref<8x128xf32, #tpu.memory_space<vmem>>, vector<8x1xf32>,
    %106 = vector.extract_strided_slice %8 {offsets = [0, 12], sizes = [8, 1], strides = [1, 1]} : vector<8x128xi32> to vector<8x1xi32>
    %107 = vector.broadcast %106 : vector<8x1xi32> to vector<8x128xi32>
    %108 = arith.cmpi eq, %9, %107 : vector<8x128xi32>
    %cst_48 = arith.constant 0.000000e+00 : f32
    %109 = vector.broadcast %cst_48 : f32 to vector<8x128xf32>
    %110 = arith.select %108, %5, %109 : vector<8x128xi1>, vector<8x128xf32>
    %cst_49 = arith.constant dense<0.000000e+00> : vector<8xf32>
    %111 = vector.multi_reduction <add>, %110, %cst_49 [1] : vector<8x128xf32> to vector<8xf32>
    %112 = vector.shape_cast %111 : vector<8xf32> to vector<8x1xf32>
    %c0_50 = arith.constant 0 : index
    %c12 = arith.constant 12 : index
    %113 = vector.load %arg5[%c0_50, %c12] : memref<8x128xf32, #tpu.memory_space<vmem>>, vector<8x1xf32>
    tpu.vector_store %arg5[%c0_50, %c12], %112 {strides = array<i32>} : memref<8x128xf32, #tpu.memory_space<vmem>>, vector<8x1xf32>,
    %114 = vector.extract_strided_slice %8 {offsets = [0, 13], sizes = [8, 1], strides = [1, 1]} : vector<8x128xi32> to vector<8x1xi32>
    %115 = vector.broadcast %114 : vector<8x1xi32> to vector<8x128xi32>
    %116 = arith.cmpi eq, %9, %115 : vector<8x128xi32>
    %cst_51 = arith.constant 0.000000e+00 : f32
    %117 = vector.broadcast %cst_51 : f32 to vector<8x128xf32>
    %118 = arith.select %116, %5, %117 : vector<8x128xi1>, vector<8x128xf32>
    %cst_52 = arith.constant dense<0.000000e+00> : vector<8xf32>
    %119 = vector.multi_reduction <add>, %118, %cst_52 [1] : vector<8x128xf32> to vector<8xf32>
    %120 = vector.shape_cast %119 : vector<8xf32> to vector<8x1xf32>
    %c0_53 = arith.constant 0 : index
    %c13 = arith.constant 13 : index
    %121 = vector.load %arg5[%c0_53, %c13] : memref<8x128xf32, #tpu.memory_space<vmem>>, vector<8x1xf32>
    tpu.vector_store %arg5[%c0_53, %c13], %120 {strides = array<i32>} : memref<8x128xf32, #tpu.memory_space<vmem>>, vector<8x1xf32>,
    %122 = vector.extract_strided_slice %8 {offsets = [0, 14], sizes = [8, 1], strides = [1, 1]} : vector<8x128xi32> to vector<8x1xi32>
    %123 = vector.broadcast %122 : vector<8x1xi32> to vector<8x128xi32>
    %124 = arith.cmpi eq, %9, %123 : vector<8x128xi32>
    %cst_54 = arith.constant 0.000000e+00 : f32
    %125 = vector.broadcast %cst_54 : f32 to vector<8x128xf32>
    %126 = arith.select %124, %5, %125 : vector<8x128xi1>, vector<8x128xf32>
    %cst_55 = arith.constant dense<0.000000e+00> : vector<8xf32>
    %127 = vector.multi_reduction <add>, %126, %cst_55 [1] : vector<8x128xf32> to vector<8xf32>
    %128 = vector.shape_cast %127 : vector<8xf32> to vector<8x1xf32>
    %c0_56 = arith.constant 0 : index
    %c14 = arith.constant 14 : index
    %129 = vector.load %arg5[%c0_56, %c14] : memref<8x128xf32, #tpu.memory_space<vmem>>, vector<8x1xf32>
    tpu.vector_store %arg5[%c0_56, %c14], %128 {strides = array<i32>} : memref<8x128xf32, #tpu.memory_space<vmem>>, vector<8x1xf32>,
    %130 = vector.extract_strided_slice %8 {offsets = [0, 15], sizes = [8, 1], strides = [1, 1]} : vector<8x128xi32> to vector<8x1xi32>
    %131 = vector.broadcast %130 : vector<8x1xi32> to vector<8x128xi32>
    %132 = arith.cmpi eq, %9, %131 : vector<8x128xi32>
    %cst_57 = arith.constant 0.000000e+00 : f32
    %133 = vector.broadcast %cst_57 : f32 to vector<8x128xf32>
    %134 = arith.select %132, %5, %133 : vector<8x128xi1>, vector<8x128xf32>
    %cst_58 = arith.constant dense<0.000000e+00> : vector<8xf32>
    %135 = vector.multi_reduction <add>, %134, %cst_58 [1] : vector<8x128xf32> to vector<8xf32>
    %136 = vector.shape_cast %135 : vector<8xf32> to vector<8x1xf32>
    %c0_59 = arith.constant 0 : index
    %c15 = arith.constant 15 : index
    %137 = vector.load %arg5[%c0_59, %c15] : memref<8x128xf32, #tpu.memory_space<vmem>>, vector<8x1xf32>
    tpu.vector_store %arg5[%c0_59, %c15], %136 {strides = array<i32>} : memref<8x128xf32, #tpu.memory_space<vmem>>, vector<8x1xf32>,
    %c0_60 = arith.constant 0 : index
    %c0_61 = arith.constant 0 : index
    %138 = vector.load %arg5[%c0_60, %c0_61] : memref<8x128xf32, #tpu.memory_space<vmem>>, vector<8x128xf32>
    %cst_62 = arith.constant dense<0xFF800000> : vector<8xf32>
    %139 = vector.multi_reduction <maximumf>, %138, %cst_62 [1] : vector<8x128xf32> to vector<8xf32>
    %140 = vector.shape_cast %139 : vector<8xf32> to vector<8x1xf32>
    %141 = vector.broadcast %140 : vector<8x1xf32> to vector<8x128xf32>
    %142 = arith.subf %138, %141 : vector<8x128xf32>
    %143 = math.exp %142 : vector<8x128xf32>
    %cst_63 = arith.constant dense<0.000000e+00> : vector<8xf32>
    %144 = vector.multi_reduction <add>, %143, %cst_63 [1] : vector<8x128xf32> to vector<8xf32>
    %145 = vector.shape_cast %144 : vector<8xf32> to vector<8x1xf32>
    %146 = vector.broadcast %145 : vector<8x1xf32> to vector<8x128xf32>
    %147 = arith.divf %143, %146 : vector<8x128xf32>
    %c0_64 = arith.constant 0 : index
    %c0_65 = arith.constant 0 : index
    %148 = vector.load %arg6[%c0_64, %c0_65] : memref<8x128xf32, #tpu.memory_space<vmem>>, vector<8x128xf32>
    tpu.vector_store %arg6[%c0_64, %c0_65], %147 {strides = array<i32>} : memref<8x128xf32, #tpu.memory_space<vmem>>, vector<8x128xf32>,
    return
  }
  func.func @transform_0(%arg0: i32) -> (i32, i32) {
    %c0_i32 = arith.constant 0 : i32
    %c0_i32_0 = arith.constant 0 : i32
    return %arg0, %c0_i32 : i32, i32
  }
  func.func @transform_1(%arg0: i32) -> (i32, i32) {
    %c0_i32 = arith.constant 0 : i32
    %c0_i32_0 = arith.constant 0 : i32
    %c0_i32_1 = arith.constant 0 : i32
    return %c0_i32, %c0_i32_0 : i32, i32
  }
  func.func @transform_2(%arg0: i32) -> (i32, i32) {
    %c0_i32 = arith.constant 0 : i32
    %c0_i32_0 = arith.constant 0 : i32
    %c0_i32_1 = arith.constant 0 : i32
    return %c0_i32, %c0_i32_0 : i32, i32
  }
  func.func @transform_3(%arg0: i32) -> (i32, i32) {
    %c0_i32 = arith.constant 0 : i32
    %c0_i32_0 = arith.constant 0 : i32
    return %arg0, %c0_i32 : i32, i32
  }
  func.func @transform_4(%arg0: i32) -> (i32, i32) {
    %c0_i32 = arith.constant 0 : i32
    %c0_i32_0 = arith.constant 0 : i32
    return %arg0, %c0_i32 : i32, i32
  }
  func.func @transform_5(%arg0: i32) -> (i32, i32) {
    %c0_i32 = arith.constant 0 : i32
    %c0_i32_0 = arith.constant 0 : i32
    return %arg0, %c0_i32 : i32, i32
  }
}

</mosaic_0001>

<llo_original>
// kernel: tpu_custom_call.1
$region0: #{tpu_custom_call.1}
  #allocation0 [shape = 'u32[]', space=smem, size = 0x4, offset = 0x4, fixed_abs, tag = 'smem constant byte address 0x4 - core index']
  #allocation1 [shape = 'u32[144,128]{1,0:T(1,128)}', space=vmem, size = 0x12000, scoped, tag = 'internal scratch']
  %s0 = inlined_call_operand.hbm [shape: bf16[8,64], index: 0, kind: input, shape index: {}]
  %s1 = inlined_call_operand.hbm [shape: bf16[64,128], index: 1, kind: input, shape index: {}]
  %s2 = inlined_call_operand.hbm [shape: bf16[128,128], index: 2, kind: input, shape index: {}]
  %s3 = inlined_call_operand.hbm [shape: s32[8,128], index: 3, kind: input, shape index: {}]
  %s4 = inlined_call_operand.hbm [shape: f32[8,128], index: 4, kind: output, shape index: {0}]
  %s5 = inlined_call_operand.hbm [shape: f32[8,128], index: 5, kind: output, shape index: {1}]
  %6 = xla_tuple %s4, %s5
  %s7 = sld [smem:[#allocation0]]
  $region50: #{tpu_custom_call.1} parent=0
    _
  %s9 = ssub.s32 1, %s7
  %s10 = scalar_select 0, %s9, %s7
  $region1: #{tpu_custom_call.1} parent=0
    #allocation2 [shape = 'u8[2048]{0}', space=vmem, size = 0x800, scoped, tag = 'input window, operand 0, single buffered']
    #allocation3 [shape = 's32[1]{0}', space=sflag, size = 0x4, scoped, tag = 'scoped memory for tpu_custom_call.1']
    #allocation4 [shape = 's32[1]{0}', space=sflag, size = 0x4, scoped, tag = 'scoped memory for tpu_custom_call.1']
    #allocation5 [shape = 'u8[16384]{0}', space=vmem, size = 0x4000, scoped, tag = 'input window, operand 1, single buffered']
    #allocation6 [shape = 's32[1]{0}', space=sflag, size = 0x4, scoped, tag = 'scoped memory for tpu_custom_call.1']
    #allocation7 [shape = 'u8[32768]{0}', space=vmem, size = 0x8000, scoped, tag = 'input window, operand 2, single buffered']
    #allocation8 [shape = 'u8[4096]{0}', space=vmem, size = 0x1000, scoped, tag = 'input window, operand 3, single buffered']
    #allocation9 [shape = 's32[1]{0}', space=sflag, size = 0x4, scoped, tag = 'scoped memory for tpu_custom_call.1']
    #allocation10 [shape = 'u8[4096]{0}', space=vmem, size = 0x1000, scoped, tag = 'output window, operand 0, single buffered']
    #allocation11 [shape = 'u8[4096]{0}', space=vmem, size = 0x1000, scoped, tag = 'output window, operand 1, single buffered']
    #allocation12 [shape = 's32[1]{0}', space=sflag, size = 0x4, scoped, tag = 'scoped memory for tpu_custom_call.1']
    %11 = vsyncpa [#allocation3], 0
    %12 = vsyncpa [#allocation6], 0
    %13 = vsyncpa [#allocation9], 0
    %14 = vsyncpa [#allocation4], 0
    %15 = vsyncpa [#allocation12], 0
    // Predicated region
    $region2: #{tpu_custom_call.1} parent=1 // pred_check
      _
    $region3: #{tpu_custom_call.1} parent=1 // pred_check_branch
      %17 = sbr.rel (0) target = $region5
    $region4: #{tpu_custom_call.1} parent=1 // pred_region
      %s19 = ssub.s32 64, 64
      %20 = vsyncadd [#allocation3], %s19
      %s22 = sshll.u32 [#allocation2], 4
      %s23 = int_to_ptr.vmem [resolvable:$true] %s22
      %25 = dma.hbm_to_vmem [thread:$0]  %s0, 64, %s23, [#allocation3]
    $region5: #{tpu_custom_call.1} parent=1 // pred_fallthru
      _
    // Predicated region
    $region6: #{tpu_custom_call.1} parent=1 // pred_check
      _
    $region7: #{tpu_custom_call.1} parent=1 // pred_check_branch
      %27 = sbr.rel (0) target = $region9
    $region8: #{tpu_custom_call.1} parent=1 // pred_region
      %s29 = ssub.s32 512, 512
      %30 = vsyncadd [#allocation6], %s29
      %s31 = sshll.u32 [#allocation5], 4
      %s32 = int_to_ptr.vmem [resolvable:$true] %s31
      %37 = dma.hbm_to_vmem [thread:$0]  %s1, 512, %s32, [#allocation6], 64, 64, 4
    $region9: #{tpu_custom_call.1} parent=1 // pred_fallthru
      _
    // Predicated region
    $region10: #{tpu_custom_call.1} parent=1 // pred_check
      _
    $region11: #{tpu_custom_call.1} parent=1 // pred_check_branch
      %39 = sbr.rel (0) target = $region13
    $region12: #{tpu_custom_call.1} parent=1 // pred_region
      %s41 = ssub.s32 1024, 1024
      %42 = vsyncadd [#allocation6], %s41
      %s43 = sshll.u32 [#allocation7], 4
      %s44 = int_to_ptr.vmem [resolvable:$true] %s43
      %49 = dma.hbm_to_vmem [thread:$0]  %s2, 1024, %s44, [#allocation6], 64, 64, 4
    $region13: #{tpu_custom_call.1} parent=1 // pred_fallthru
      _
    // Predicated region
    $region14: #{tpu_custom_call.1} parent=1 // pred_check
      _
    $region15: #{tpu_custom_call.1} parent=1 // pred_check_branch
      %51 = sbr.rel (0) target = $region17
    $region16: #{tpu_custom_call.1} parent=1 // pred_region
      %s53 = ssub.s32 128, 128
      %54 = vsyncadd [#allocation9], %s53
      %s56 = sshll.u32 [#allocation8], 4
      %s57 = int_to_ptr.vmem [resolvable:$true] %s56
      %59 = dma.hbm_to_vmem [thread:$0]  %s3, 128, %s57, [#allocation9]
    $region17: #{tpu_custom_call.1} parent=1 // pred_fallthru
      _
    // Predicated region
    $region18: #{tpu_custom_call.1} parent=1 // pred_check
      _
    $region19: #{tpu_custom_call.1} parent=1 // pred_check_branch
      %61 = sbr.rel (0) target = $region21
    $region20: #{tpu_custom_call.1} parent=1 // pred_region
      %62 = dma.done [#allocation3], 64
    $region21: #{tpu_custom_call.1} parent=1 // pred_fallthru
      _
    // Predicated region
    $region22: #{tpu_custom_call.1} parent=1 // pred_check
      _
    $region23: #{tpu_custom_call.1} parent=1 // pred_check_branch
      %64 = sbr.rel (0) target = $region25
    $region24: #{tpu_custom_call.1} parent=1 // pred_region
      %65 = dma.done [#allocation6], 512
    $region25: #{tpu_custom_call.1} parent=1 // pred_fallthru
      _
    // Predicated region
    $region26: #{tpu_custom_call.1} parent=1 // pred_check
      _
    $region27: #{tpu_custom_call.1} parent=1 // pred_check_branch
      %67 = sbr.rel (0) target = $region29
    $region28: #{tpu_custom_call.1} parent=1 // pred_region
      %68 = dma.done [#allocation6], 1024
    $region29: #{tpu_custom_call.1} parent=1 // pred_fallthru
      _
    // Predicated region
    $region30: #{tpu_custom_call.1} parent=1 // pred_check
      _
    $region31: #{tpu_custom_call.1} parent=1 // pred_check_branch
      %70 = sbr.rel (0) target = $region33
    $region32: #{tpu_custom_call.1} parent=1 // pred_region
      %71 = dma.done [#allocation9], 128
    $region33: #{tpu_custom_call.1} parent=1 // pred_fallthru
      _
    %v73 = vld [vmem:[#allocation2] sm:$0xf]
    %v74 = vld [vmem:[#allocation5] sm:$0xf]
    %v75 = vld [vmem:[#allocation5 + $0x4] sm:$0xf]
    %v76 = vld [vmem:[#allocation5 + $0x8] sm:$0xf]
    %v77 = vld [vmem:[#allocation5 + $0xc] sm:$0xf]
    %v78 = vld [vmem:[#allocation5 + $0x10] sm:$0xf]
    %v79 = vld [vmem:[#allocation5 + $0x14] sm:$0xf]
    %v80 = vld [vmem:[#allocation5 + $0x18] sm:$0xf]
    %v81 = vld [vmem:[#allocation5 + $0x1c] sm:$0xf]
    %v90 = vunpack.c.l.b16 %v74
    %v91 = vunpack.c.l.b16 %v75
    %v92 = vunpack.c.l.b16 %v76
    %v93 = vunpack.c.l.b16 %v77
    %v94 = vunpack.c.l.b16 %v78
    %v95 = vunpack.c.l.b16 %v79
    %v96 = vunpack.c.l.b16 %v80
    %v97 = vunpack.c.l.b16 %v81
    %v98 = vpack.c.b16 %v91, %v90
    %v99 = vpack.c.b16 %v93, %v92
    %v100 = vpack.c.b16 %v95, %v94
    %v101 = vpack.c.b16 %v97, %v96
    %vm106 = vcmask 523264
    %v108 = vsel %vm106, %v73, 0
    %110 = vmatprep.subr.bf16.mxu0 0
    %111 = vmatpush1.bf16.msra.mxu0 0
    %112 = vmatprep.subr.bf16.mxu0 0
    %113 = vmatpush1.bf16.msra.mxu0 0
    %114 = vmatprep.subr.bf16.mxu0 0
    %115 = vmatpush1.bf16.msra.mxu0 0
    %116 = vmatprep.subr.bf16.mxu0 0
    %117 = vmatpush1.bf16.msra.mxu0 0
    %118 = vmatprep.subr.bf16.mxu0 0
    %119 = vmatpush1.bf16.msra.mxu0 %v101
    %120 = vmatprep.subr.bf16.mxu0 0
    %121 = vmatpush1.bf16.msra.mxu0 %v100
    %122 = vmatprep.subr.bf16.mxu0 0
    %123 = vmatpush1.bf16.msra.mxu0 %v99
    %124 = vmatprep.subr.bf16.mxu0 0
    %125 = vmatpush1.bf16.msra.mxu0 %v98
    %126 = vmatprep.subr.bf16.mxu0 0
    %127 = vmatpush2.bf16.msra.mxu0 0
    %128 = vmatprep.subr.bf16.mxu0 0
    %129 = vmatpush2.bf16.msra.mxu0 0
    %130 = vmatprep.subr.bf16.mxu0 0
    %131 = vmatpush2.bf16.msra.mxu0 0
    %132 = vmatprep.subr.bf16.mxu0 0
    %133 = vmatpush2.bf16.msra.mxu0 0
    %134 = vmatprep.subr.bf16.mxu0 0
    %135 = vmatpush2.bf16.msra.mxu0 0
    %136 = vmatprep.subr.bf16.mxu0 0
    %137 = vmatpush2.bf16.msra.mxu0 0
    %138 = vmatprep.subr.bf16.mxu0 0
    %139 = vmatpush2.bf16.msra.mxu0 0
    %140 = vmatprep.subr.bf16.mxu0 0
    %141 = vmatpush2.bf16.msra.mxu0 0
    %142 = vmatprep.mubr.bf16.mxu0 0
    %143 = vmatmul.mubr.bf16.gmra.mxu0 %v108
    %v144 = vpop.f32.mrf.mxu0
    %v145 = vadd.f32 0.0, %v144
    %v146 = vpop.f32.mrf.mxu0
    %v147 = vpop.f32.mrf.mxu0
    %v148 = vpop.f32.mrf.mxu0
    %149 = vdwg.mxu0
    %v150 = vpack.c.bf16 %v145, %v145
    %v151 = vld [vmem:[#allocation7] sm:$0xf]
    %v152 = vld [vmem:[#allocation7 + $0x4] sm:$0xf]
    %v153 = vld [vmem:[#allocation7 + $0x8] sm:$0xf]
    %v154 = vld [vmem:[#allocation7 + $0xc] sm:$0xf]
    %v155 = vld [vmem:[#allocation7 + $0x10] sm:$0xf]
    %v156 = vld [vmem:[#allocation7 + $0x14] sm:$0xf]
    %v157 = vld [vmem:[#allocation7 + $0x18] sm:$0xf]
    %v158 = vld [vmem:[#allocation7 + $0x1c] sm:$0xf]
    %v159 = vld [vmem:[#allocation7 + $0x20] sm:$0xf]
    %v160 = vld [vmem:[#allocation7 + $0x24] sm:$0xf]
    %v161 = vld [vmem:[#allocation7 + $0x28] sm:$0xf]
    %v162 = vld [vmem:[#allocation7 + $0x2c] sm:$0xf]
    %v163 = vld [vmem:[#allocation7 + $0x30] sm:$0xf]
    %v164 = vld [vmem:[#allocation7 + $0x34] sm:$0xf]
    %v165 = vld [vmem:[#allocation7 + $0x38] sm:$0xf]
    %v166 = vld [vmem:[#allocation7 + $0x3c] sm:$0xf]
    %v183 = vunpack.c.l.b16 %v151
    %v184 = vunpack.c.l.b16 %v152
    %v185 = vunpack.c.l.b16 %v153
    %v186 = vunpack.c.l.b16 %v154
    %v187 = vunpack.c.l.b16 %v155
    %v188 = vunpack.c.l.b16 %v156
    %v189 = vunpack.c.l.b16 %v157
    %v190 = vunpack.c.l.b16 %v158
    %v191 = vunpack.c.l.b16 %v159
    %v192 = vunpack.c.l.b16 %v160
    %v193 = vunpack.c.l.b16 %v161
    %v194 = vunpack.c.l.b16 %v162
    %v195 = vunpack.c.l.b16 %v163
    %v196 = vunpack.c.l.b16 %v164
    %v197 = vunpack.c.l.b16 %v165
    %v198 = vunpack.c.l.b16 %v166
    %v199 = vpack.c.b16 %v184, %v183
    %v200 = vpack.c.b16 %v186, %v185
    %v201 = vpack.c.b16 %v188, %v187
    %v202 = vpack.c.b16 %v190, %v189
    %v203 = vpack.c.b16 %v192, %v191
    %v204 = vpack.c.b16 %v194, %v193
    %v205 = vpack.c.b16 %v196, %v195
    %v206 = vpack.c.b16 %v198, %v197
    %215 = vmatprep.subr.bf16.mxu0 0
    %216 = vmatpush1.bf16.msra.mxu0 %v206
    %217 = vmatprep.subr.bf16.mxu0 0
    %218 = vmatpush1.bf16.msra.mxu0 %v205
    %219 = vmatprep.subr.bf16.mxu0 0
    %220 = vmatpush1.bf16.msra.mxu0 %v204
    %221 = vmatprep.subr.bf16.mxu0 0
    %222 = vmatpush1.bf16.msra.mxu0 %v203
    %223 = vmatprep.subr.bf16.mxu0 0
    %224 = vmatpush1.bf16.msra.mxu0 %v202
    %225 = vmatprep.subr.bf16.mxu0 0
    %226 = vmatpush1.bf16.msra.mxu0 %v201
    %227 = vmatprep.subr.bf16.mxu0 0
    %228 = vmatpush1.bf16.msra.mxu0 %v200
    %229 = vmatprep.subr.bf16.mxu0 0
    %230 = vmatpush1.bf16.msra.mxu0 %v199
    %231 = vmatprep.subr.bf16.mxu0 0
    %232 = vmatpush2.bf16.msra.mxu0 0
    %233 = vmatprep.subr.bf16.mxu0 0
    %234 = vmatpush2.bf16.msra.mxu0 0
    %235 = vmatprep.subr.bf16.mxu0 0
    %236 = vmatpush2.bf16.msra.mxu0 0
    %237 = vmatprep.subr.bf16.mxu0 0
    %238 = vmatpush2.bf16.msra.mxu0 0
    %239 = vmatprep.subr.bf16.mxu0 0
    %240 = vmatpush2.bf16.msra.mxu0 0
    %241 = vmatprep.subr.bf16.mxu0 0
    %242 = vmatpush2.bf16.msra.mxu0 0
    %243 = vmatprep.subr.bf16.mxu0 0
    %244 = vmatpush2.bf16.msra.mxu0 0
    %245 = vmatprep.subr.bf16.mxu0 0
    %246 = vmatpush2.bf16.msra.mxu0 0
    %247 = vmatprep.mubr.bf16.mxu0 0
    %248 = vmatmul.mubr.bf16.gmra.mxu0 %v150
    %v249 = vpop.f32.mrf.mxu0
    %v250 = vadd.f32 0.0, %v249
    %v251 = vpop.f32.mrf.mxu0
    %v252 = vpop.f32.mrf.mxu0
    %v253 = vpop.f32.mrf.mxu0
    %254 = vdwg.mxu0
    %255 = vst [vmem:[#allocation10] sm:$0xff] -1e+30
    %v256 = vld [vmem:[#allocation8] sm:$0xff]
    %v257 = vlaneseq
    %v258 = vand.u32 %v257, 127
    %259 = vset.pattern.permute.xlu0 0
    %260 = vperm.xlu0 %259, %v256
    %v261 = vpop.permute.xlu0 %260
    %vm262 = vcmp.eq.s32.totalorder %v258, %v261
    %v263 = vsel %vm262, %v250, 0.0
    %264 = vadd.xlane.f32.xlu0 %v263
    %v265 = vpop.xlane.xlu0 %264
    %vm266 = vcmask 7168
    %267 = vst.msk [vmem:[#allocation10] sm:$0xff] %vm266, %v265
    %268 = vset.pattern.permute.xlu0 1
    %269 = vperm.xlu0 %268, %v256
    %v270 = vpop.permute.xlu0 %269
    %vm271 = vcmp.eq.s32.totalorder %v258, %v270
    %v272 = vsel %vm271, %v250, 0.0
    %273 = vadd.xlane.f32.xlu0 %v272
    %v274 = vpop.xlane.xlu0 %273
    %vm275 = vcmask 15368
    %276 = vst.msk [vmem:[#allocation10] sm:$0xff] %vm275, %v274
    %277 = vset.pattern.permute.xlu0 2
    %278 = vperm.xlu0 %277, %v256
    %v279 = vpop.permute.xlu0 %278
    %vm280 = vcmp.eq.s32.totalorder %v258, %v279
    %v281 = vsel %vm280, %v250, 0.0
    %282 = vadd.xlane.f32.xlu0 %v281
    %v283 = vpop.xlane.xlu0 %282
    %vm284 = vcmask 23568
    %285 = vst.msk [vmem:[#allocation10] sm:$0xff] %vm284, %v283
    %286 = vset.pattern.permute.xlu0 3
    %287 = vperm.xlu0 %286, %v256
    %v288 = vpop.permute.xlu0 %287
    %vm289 = vcmp.eq.s32.totalorder %v258, %v288
    %v290 = vsel %vm289, %v250, 0.0
    %291 = vadd.xlane.f32.xlu0 %v290
    %v292 = vpop.xlane.xlu0 %291
    %vm293 = vcmask 31768
    %294 = vst.msk [vmem:[#allocation10] sm:$0xff] %vm293, %v292
    %295 = vset.pattern.permute.xlu0 4
    %296 = vperm.xlu0 %295, %v256
    %v297 = vpop.permute.xlu0 %296
    %vm298 = vcmp.eq.s32.totalorder %v258, %v297
    %v299 = vsel %vm298, %v250, 0.0
    %300 = vadd.xlane.f32.xlu0 %v299
    %v301 = vpop.xlane.xlu0 %300
    %vm302 = vcmask 39968
    %303 = vst.msk [vmem:[#allocation10] sm:$0xff] %vm302, %v301
    %304 = vset.pattern.permute.xlu0 5
    %305 = vperm.xlu0 %304, %v256
    %v306 = vpop.permute.xlu0 %305
    %vm307 = vcmp.eq.s32.totalorder %v258, %v306
    %v308 = vsel %vm307, %v250, 0.0
    %309 = vadd.xlane.f32.xlu0 %v308
    %v310 = vpop.xlane.xlu0 %309
    %vm311 = vcmask 48168
    %312 = vst.msk [vmem:[#allocation10] sm:$0xff] %vm311, %v310
    %313 = vset.pattern.permute.xlu0 6
    %314 = vperm.xlu0 %313, %v256
    %v315 = vpop.permute.xlu0 %314
    %vm316 = vcmp.eq.s32.totalorder %v258, %v315
    %v317 = vsel %vm316, %v250, 0.0
    %318 = vadd.xlane.f32.xlu0 %v317
    %v319 = vpop.xlane.xlu0 %318
    %vm320 = vcmask 56368
    %321 = vst.msk [vmem:[#allocation10] sm:$0xff] %vm320, %v319
    %322 = vset.pattern.permute.xlu0 7
    %323 = vperm.xlu0 %322, %v256
    %v324 = vpop.permute.xlu0 %323
    %vm325 = vcmp.eq.s32.totalorder %v258, %v324
    %v326 = vsel %vm325, %v250, 0.0
    %327 = vadd.xlane.f32.xlu0 %v326
    %v328 = vpop.xlane.xlu0 %327
    %vm329 = vcmask 64568
    %330 = vst.msk [vmem:[#allocation10] sm:$0xff] %vm329, %v328
    %331 = vset.pattern.permute.xlu0 8
    %332 = vperm.xlu0 %331, %v256
    %v333 = vpop.permute.xlu0 %332
    %vm334 = vcmp.eq.s32.totalorder %v258, %v333
    %v335 = vsel %vm334, %v250, 0.0
    %336 = vadd.xlane.f32.xlu0 %v335
    %v337 = vpop.xlane.xlu0 %336
    %vm338 = vcmask 72768
    %339 = vst.msk [vmem:[#allocation10] sm:$0xff] %vm338, %v337
    %340 = vset.pattern.permute.xlu0 9
    %341 = vperm.xlu0 %340, %v256
    %v342 = vpop.permute.xlu0 %341
    %vm343 = vcmp.eq.s32.totalorder %v258, %v342
    %v344 = vsel %vm343, %v250, 0.0
    %345 = vadd.xlane.f32.xlu0 %v344
    %v346 = vpop.xlane.xlu0 %345
    %vm347 = vcmask 80968
    %348 = vst.msk [vmem:[#allocation10] sm:$0xff] %vm347, %v346
    %349 = vset.pattern.permute.xlu0 10
    %350 = vperm.xlu0 %349, %v256
    %v351 = vpop.permute.xlu0 %350
    %vm352 = vcmp.eq.s32.totalorder %v258, %v351
    %v353 = vsel %vm352, %v250, 0.0
    %354 = vadd.xlane.f32.xlu0 %v353
    %v355 = vpop.xlane.xlu0 %354
    %vm356 = vcmask 89168
    %357 = vst.msk [vmem:[#allocation10] sm:$0xff] %vm356, %v355
    %358 = vset.pattern.permute.xlu0 11
    %359 = vperm.xlu0 %358, %v256
    %v360 = vpop.permute.xlu0 %359
    %vm361 = vcmp.eq.s32.totalorder %v258, %v360
    %v362 = vsel %vm361, %v250, 0.0
    %363 = vadd.xlane.f32.xlu0 %v362
    %v364 = vpop.xlane.xlu0 %363
    %vm365 = vcmask 97368
    %366 = vst.msk [vmem:[#allocation10] sm:$0xff] %vm365, %v364
    %367 = vset.pattern.permute.xlu0 12
    %368 = vperm.xlu0 %367, %v256
    %v369 = vpop.permute.xlu0 %368
    %vm370 = vcmp.eq.s32.totalorder %v258, %v369
    %v371 = vsel %vm370, %v250, 0.0
    %372 = vadd.xlane.f32.xlu0 %v371
    %v373 = vpop.xlane.xlu0 %372
    %vm374 = vcmask 105568
    %375 = vst.msk [vmem:[#allocation10] sm:$0xff] %vm374, %v373
    %376 = vset.pattern.permute.xlu0 13
    %377 = vperm.xlu0 %376, %v256
    %v378 = vpop.permute.xlu0 %377
    %vm379 = vcmp.eq.s32.totalorder %v258, %v378
    %v380 = vsel %vm379, %v250, 0.0
    %381 = vadd.xlane.f32.xlu0 %v380
    %v382 = vpop.xlane.xlu0 %381
    %vm383 = vcmask 113768
    %384 = vst.msk [vmem:[#allocation10] sm:$0xff] %vm383, %v382
    %385 = vset.pattern.permute.xlu0 14
    %386 = vperm.xlu0 %385, %v256
    %v387 = vpop.permute.xlu0 %386
    %vm388 = vcmp.eq.s32.totalorder %v258, %v387
    %v389 = vsel %vm388, %v250, 0.0
    %390 = vadd.xlane.f32.xlu0 %v389
    %v391 = vpop.xlane.xlu0 %390
    %vm392 = vcmask 121968
    %393 = vst.msk [vmem:[#allocation10] sm:$0xff] %vm392, %v391
    %394 = vset.pattern.permute.xlu0 15
    %395 = vperm.xlu0 %394, %v256
    %v396 = vpop.permute.xlu0 %395
    %vm397 = vcmp.eq.s32.totalorder %v258, %v396
    %v398 = vsel %vm397, %v250, 0.0
    %399 = vadd.xlane.f32.xlu0 %v398
    %v400 = vpop.xlane.xlu0 %399
    %vm401 = vcmask 130168
    %402 = vst.msk [vmem:[#allocation10] sm:$0xff] %vm401, %v400
    %v403 = vld [vmem:[#allocation10] sm:$0xff]
    %404 = vmax.xlane.f32.xlu0 %v403
    %v405 = vpop.xlane.xlu0 %404
    %v406 = vsub.f32 %v403, %v405
    %v407 = vmul.f32 %v406, 1.442695
    %v408 = vpow.pop %v407
    %409 = vadd.xlane.f32.xlu0 %v408
    %v410 = vpop.xlane.xlu0 %409
    %v411 = vrcp.pop %v410
    %v412 = vmul.f32 %v408, %v411
    %413 = vst [vmem:[#allocation11] sm:$0xff] %v412
    // Predicated region
    $region34: #{tpu_custom_call.1} parent=1 // pred_check
      _
    $region35: #{tpu_custom_call.1} parent=1 // pred_check_branch
      %415 = sbr.rel (0) target = $region37
    $region36: #{tpu_custom_call.1} parent=1 // pred_region
      %s417 = ssub.s32 128, 128
      %418 = vsyncadd [#allocation4], %s417
      %s420 = sshll.u32 [#allocation10], 4
      %s421 = int_to_ptr.vmem [resolvable:$true] %s420
      %423 = dma.vmem_to_hbm [thread:$0]  %s421, 128, %s4, [#allocation4]
    $region37: #{tpu_custom_call.1} parent=1 // pred_fallthru
      _
    // Predicated region
    $region38: #{tpu_custom_call.1} parent=1 // pred_check
      _
    $region39: #{tpu_custom_call.1} parent=1 // pred_check_branch
      %425 = sbr.rel (0) target = $region41
    $region40: #{tpu_custom_call.1} parent=1 // pred_region
      %s427 = ssub.s32 128, 128
      %428 = vsyncadd [#allocation12], %s427
      %s430 = sshll.u32 [#allocation11], 4
      %s431 = int_to_ptr.vmem [resolvable:$true] %s430
      %433 = dma.vmem_to_hbm [thread:$0]  %s431, 128, %s5, [#allocation12]
    $region41: #{tpu_custom_call.1} parent=1 // pred_fallthru
      _
    // Predicated region
    $region42: #{tpu_custom_call.1} parent=1 // pred_check
      _
    $region43: #{tpu_custom_call.1} parent=1 // pred_check_branch
      %435 = sbr.rel (0) target = $region45
    $region44: #{tpu_custom_call.1} parent=1 // pred_region
      %436 = dma.done [#allocation4], 128
    $region45: #{tpu_custom_call.1} parent=1 // pred_fallthru
      _
    // Predicated region
    $region46: #{tpu_custom_call.1} parent=1 // pred_check
      _
    $region47: #{tpu_custom_call.1} parent=1 // pred_check_branch
      %438 = sbr.rel (0) target = $region49
    $region48: #{tpu_custom_call.1} parent=1 // pred_region
      %439 = dma.done [#allocation12], 128
    $region49: #{tpu_custom_call.1} parent=1 // pred_fallthru
      _
    %440 = vsyncpa [#allocation3], 1
    %441 = vsyncpa [#allocation6], 1
    %442 = vsyncpa [#allocation9], 1
    %443 = vsyncpa [#allocation4], 1
    %444 = vsyncpa [#allocation12], 1

</llo_original>
